<compile_context>
chip_gen: v7x
topology: tpu7x:2x2x1
jax: 0.10.0
libtpu: 0.0.40
codegen_flags: <defaults>
</compile_context>

<pallas_src>
import functools

import jax
import jax.numpy as jnp
from jax.experimental import pallas as pl
from jax.experimental.pallas import tpu as pltpu

_LANES = 128


def _corrected_n_loss_kernel(
    pv_ref, eps_ref, partial_ref, acc_ref, *,
    rows, block_rows, blocks_per_par, needs_mask,
):
    """Per-block elementwise loss, vector-accumulated; finalized at last step."""
    p = pl.program_id(0)   # partial-sum partition ("parallel")
    j = pl.program_id(1)   # reduction axis within a partition ("arbitrary")

    @pl.when(j == 0)
    def _():
        acc_ref[...] = jnp.zeros_like(acc_ref)

    pv = pv_ref[...].astype(jnp.float32)
    eps = eps_ref[...].astype(jnp.float32)

    # 2 * loss = log(pv) + eps / pv     (the 0.5 is folded into the wrapper)
    val = jnp.log(pv) + eps * pl.reciprocal(pv)

    if needs_mask:
        # Only edge / clamped-phantom blocks pay for the mask; interior blocks
        # take the unmasked accumulate below (runtime-gated via pl.when).
        row0 = (p * blocks_per_par + j) * block_rows
        is_interior = row0 + block_rows <= rows

        @pl.when(is_interior)
        def _():
            acc_ref[...] += jnp.sum(val, axis=0, keepdims=True)

        @pl.when(jnp.logical_not(is_interior))
        def _():
            # Row-index mask (no flat *128 index -> no int32 overflow).  The
            # jnp.where form is NaN-safe: garbage rows never propagate.
            row_ids = jax.lax.broadcasted_iota(jnp.int32, val.shape, 0) + row0
            masked = jnp.where(row_ids < rows, val, 0.0)
            acc_ref[...] += jnp.sum(masked, axis=0, keepdims=True)
    else:
        # Aligned fast path: no iota, no compare, no select — pure VPU adds
        # plus one sublane collapse per step.
        acc_ref[...] += jnp.sum(val, axis=0, keepdims=True)

    @pl.when(j == pl.num_programs(1) - 1)
    def _():
        partial_ref[0, 0] = jnp.sum(acc_ref[...])


def _tpu_defaults(dtype):
    """Chip/dtype-aware defaults for (row_tile, n_par)."""
    kind = ""
    try:
        kind = jax.devices()[0].device_kind.lower()
    except Exception:  # no devices visible at trace time: keep safe defaults
        pass
    # Multi-TensorCore parts benefit from the leading partition axis; on
    # single-TC v5e/v6e the split is pure overhead (clamped phantom block,
    # per-step mask, second finalize), so keep n_par = 1 there.
    multi_core = any(tag in kind for tag in ("v7", "7x", "v4", "v5p"))
    n_par = 2 if multi_core else 1
    # bf16/fp16 stream half the bytes per row -> double the row tile so each
    # grid step still moves ~4 MiB and the ~0.35 us/step fixed cost stays
    # <10% of per-step HBM time, even at v7x's ~3.2 TB/s.
    itemsize = jnp.dtype(dtype).itemsize
    row_tile = 4096 if itemsize >= 4 else 8192
    return row_tile, n_par


@functools.partial(jax.jit, static_argnames=("row_tile", "n_par", "n_buffers"))
def _corrected_n_loss_impl(pred_var, target_eps_squared, *, row_tile, n_par,
                           n_buffers):
    n_elems = pred_var.size
    flat_pv = pred_var.reshape(-1)
    flat_eps = target_eps_squared.reshape(-1)

    rows = n_elems // _LANES
    tail = n_elems - rows * _LANES

    # <=127 trailing elements: plain jnp (tiny) — never materialize padded
    # copies of the full inputs (review item 5).
    if tail:
        t_pv = flat_pv[rows * _LANES:].astype(jnp.float32)
        t_eps = flat_eps[rows * _LANES:].astype(jnp.float32)
        tail_sum = jnp.sum(jnp.log(t_pv) + t_eps / t_pv)
    else:
        tail_sum = jnp.float32(0.0)

    if rows == 0:
        # TODO(synk): inputs smaller than one 128-lane row never hit the kernel.
        return (0.5 * tail_sum / n_elems).astype(jnp.float32)

    if tail:
        # TODO(synk): there is no zero-copy 2-D (rows, 128) view of a buffer
        # whose length is not a multiple of 128 (and large 1-D VMEM blocks are
        # layout-hostile on TPU), so XLA may materialize this aligned prefix
        # once on the unaligned path.  Aligned sizes stream zero-copy.
        flat_pv = flat_pv[: rows * _LANES]
        flat_eps = flat_eps[: rows * _LANES]
    pv2d = flat_pv.reshape(rows, _LANES)
    eps2d = flat_eps.reshape(rows, _LANES)

    # Row-block size: a large tile (multiple of 8), or the full (small) array.
    if rows <= row_tile:
        block_rows = rows                       # block == full array dim
    else:
        assert row_tile % 8 == 0, "row_tile must be a multiple of 8"
        block_rows = row_tile
    n_blocks = pl.cdiv(rows, block_rows)

    # Split the reduction into <= n_par partial sums (engages both TensorCores
    # on multi-core chips via the "parallel" leading axis).
    n_par_eff = max(1, min(n_par, n_blocks))
    blocks_per_par = pl.cdiv(n_blocks, n_par_eff)

    has_edge = n_blocks * block_rows != rows
    has_phantom = n_par_eff * blocks_per_par != n_blocks
    needs_mask = has_edge or has_phantom

    last_block = n_blocks - 1
    if has_phantom:
        def in_map(p, j):
            return (jnp.minimum(p * blocks_per_par + j, last_block), 0)
    else:
        def in_map(p, j):
            return (p * blocks_per_par + j, 0)

    if n_buffers != 2:
        in_spec = pl.BlockSpec((block_rows, _LANES), in_map,
                               pipeline_mode=pl.Buffered(n_buffers))
    else:
        in_spec = pl.BlockSpec((block_rows, _LANES), in_map)

    kernel = functools.partial(
        _corrected_n_loss_kernel,
        rows=rows,
        block_rows=block_rows,
        blocks_per_par=blocks_per_par,
        needs_mask=needs_mask,
    )

    # VMEM budget: 2 inputs x n_buffers blocks + scratch/slack, clamped to a
    # limit every generation can grant (v7x physical VMEM is 64 MiB/TC).
    itemsize = jnp.dtype(pred_var.dtype).itemsize
    block_bytes = block_rows * _LANES * itemsize
    vmem_limit_bytes = int(min(
        56 * 1024 * 1024,
        max(32 * 1024 * 1024, 2 * max(n_buffers, 2) * block_bytes + (4 << 20)),
    ))

    partials = pl.pallas_call(
        kernel,
        out_shape=jax.ShapeDtypeStruct((n_par_eff, 1), jnp.float32),
        grid_spec=pltpu.PrefetchScalarGridSpec(
            num_scalar_prefetch=0,
            grid=(n_par_eff, blocks_per_par),
            in_specs=[in_spec, in_spec],
            out_specs=pl.BlockSpec(
                (1, 1), lambda p, j: (p, 0), memory_space=pltpu.SMEM
            ),
            scratch_shapes=[pltpu.VMEM((1, _LANES), jnp.float32)],
        ),
        compiler_params=pltpu.CompilerParams(
            dimension_semantics=("parallel", "arbitrary"),
            vmem_limit_bytes=vmem_limit_bytes,
        ),
    )(pv2d, eps2d)

    total = jnp.sum(partials) + tail_sum
    return (0.5 * total / n_elems).astype(jnp.float32)


def corrected_n_loss(pred_var, target_eps_squared, *, row_tile=None,
                     n_par=None, n_buffers=3):
    """Pallas implementation of CorrectedNLoss.forward (returns scalar mean)."""
    assert pred_var.shape == target_eps_squared.shape
    auto_tile, auto_par = _tpu_defaults(pred_var.dtype)
    row_tile = auto_tile if row_tile is None else row_tile
    n_par = auto_par if n_par is None else n_par
    try:
        return _corrected_n_loss_impl(pred_var, target_eps_squared,
                                      row_tile=row_tile, n_par=n_par,
                                      n_buffers=n_buffers)
    except Exception:
        # Graceful fallback if this jax build rejects pl.Buffered /
        # pipeline_mode: retry with plain double buffering.
        if n_buffers == 2:
            raise
        return _corrected_n_loss_impl(pred_var, target_eps_squared,
                                      row_tile=row_tile, n_par=n_par,
                                      n_buffers=2)


def _reference(pred_var, target_eps_squared):
    pv = pred_var.astype(jnp.float32)
    eps = target_eps_squared.astype(jnp.float32)
    return jnp.mean(0.5 * jnp.log(pv) + eps / (2.0 * pv))


if __name__ == "__main__":
    key = jax.random.PRNGKey(0)

    def make_inputs(k, shape, dtype=jnp.float32):
        k1, k2 = jax.random.split(k)
        # pred_var must be strictly positive (it is a predicted variance).
        pv = jnp.exp(jax.random.normal(k1, shape, dtype=jnp.float32) * 0.5)
        eps = jnp.square(jax.random.normal(k2, shape, dtype=jnp.float32))
        return pv.astype(dtype), eps.astype(dtype)

    k0, k1, k2, k3 = jax.random.split(key, 4)

    # Primary example: (batch=2, seq=8, hidden=32) variance predictions.
    pv, eps = make_inputs(k0, (2, 8, 32))
    out = jax.block_until_ready(corrected_n_loss(pv, eps))
    ref = _reference(pv, eps)
    assert jnp.allclose(out, ref, rtol=1e-5, atol=1e-6), (out, ref)

    # Unaligned element count: 128-aligned prefix through the kernel, the
    # 26-element tail folded in with plain jnp (no padded copies, no lane mask).
    pv, eps = make_inputs(k1, (3, 50, 7))
    out = jax.block_until_ready(corrected_n_loss(pv, eps))
    ref = _reference(pv, eps)
    assert jnp.allclose(out, ref, rtol=1e-5, atol=1e-6), (out, ref)

    # Multi-block + explicit 2-way partition split with a masked edge block
    # and a clamped phantom block (tiny row_tile only to exercise that logic).
    pv, eps = make_inputs(k2, (37, 128))
    out = jax.block_until_ready(corrected_n_loss(pv, eps, row_tile=8, n_par=2))
    ref = _reference(pv, eps)
    assert jnp.allclose(out, ref, rtol=1e-5, atol=1e-6), (out, ref)

    # Native-dtype (bf16) streaming path; the kernel upcasts per tile.
    pv, eps = make_inputs(k3, (4, 512), dtype=jnp.bfloat16)
    out = jax.block_until_ready(corrected_n_loss(pv, eps))
    ref = _reference(pv, eps)
    assert jnp.allclose(out, ref, rtol=1e-4, atol=1e-5), (out, ref)

    print("KERNEL_OK")
</pallas_src>

<mosaic_0001>
module attributes {stable_mosaic.version = 11 : i64} {
  func.func @_corrected_n_loss_kernel(%arg0: i32, %arg1: i32, %arg2: memref<4x128xf32, #tpu.memory_space<vmem>>, %arg3: memref<4x128xf32, #tpu.memory_space<vmem>>, %arg4: memref<1x1xf32, #tpu.memory_space<smem>>, %arg5: memref<1x128xf32, #tpu.memory_space<vmem>>) attributes {dimension_semantics = [#tpu.dimension_semantics<parallel>, #tpu.dimension_semantics<arbitrary>], iteration_bounds = array<i64: 1, 1>, scalar_prefetch = 0 : i64, scratch_operands = 1 : i64, tpu.core_type = #tpu.core_type<tc>, window_params = [{transform_indices = @transform_0, window_bounds = array<i64: 4, 128>}, {transform_indices = @transform_1, window_bounds = array<i64: 4, 128>}, {transform_indices = @transform_2, window_bounds = array<i64: 1, 1>}]} {
    %c0_i32 = arith.constant 0 : i32
    %0 = arith.cmpi eq, %arg1, %c0_i32 : i32
    %1 = arith.extui %0 : i1 to i32
    %c0_i32_0 = arith.constant 0 : i32
    %2 = arith.cmpi ne, %1, %c0_i32_0 : i32
    scf.if %2 {
      %cst_10 = arith.constant 0.000000e+00 : f32
      %17 = vector.broadcast %cst_10 : f32 to vector<1x128xf32>
      %c0_11 = arith.constant 0 : index
      %c0_12 = arith.constant 0 : index
      %18 = vector.load %arg5[%c0_11, %c0_12] : memref<1x128xf32, #tpu.memory_space<vmem>>, vector<1x128xf32>
      tpu.vector_store %arg5[%c0_11, %c0_12], %17 {strides = array<i32>} : memref<1x128xf32, #tpu.memory_space<vmem>>, vector<1x128xf32>,
    } else {
    }
    %c0 = arith.constant 0 : index
    %c0_1 = arith.constant 0 : index
    %3 = vector.load %arg2[%c0, %c0_1] : memref<4x128xf32, #tpu.memory_space<vmem>>, vector<4x128xf32>
    %c0_2 = arith.constant 0 : index
    %c0_3 = arith.constant 0 : index
    %4 = vector.load %arg3[%c0_2, %c0_3] : memref<4x128xf32, #tpu.memory_space<vmem>>, vector<4x128xf32>
    %5 = math.log %3 : vector<4x128xf32>
    %6 = tpu.reciprocal %3 : vector<4x128xf32> -> vector<4x128xf32>
    %7 = arith.mulf %4, %6 : vector<4x128xf32>
    %8 = arith.addf %5, %7 : vector<4x128xf32>
    %c0_4 = arith.constant 0 : index
    %c0_5 = arith.constant 0 : index
    %9 = vector.load %arg5[%c0_4, %c0_5] : memref<1x128xf32, #tpu.memory_space<vmem>>, vector<1x128xf32>
    %cst = arith.constant dense<0.000000e+00> : vector<128xf32>
    %10 = vector.multi_reduction <add>, %8, %cst [0] : vector<4x128xf32> to vector<128xf32>
    %11 = vector.shape_cast %10 : vector<128xf32> to vector<1x128xf32>
    %12 = arith.addf %9, %11 : vector<1x128xf32>
    %c0_6 = arith.constant 0 : index
    %c0_7 = arith.constant 0 : index
    %13 = vector.load %arg5[%c0_6, %c0_7] : memref<1x128xf32, #tpu.memory_space<vmem>>, vector<1x128xf32>
    tpu.vector_store %arg5[%c0_6, %c0_7], %12 {strides = array<i32>} : memref<1x128xf32, #tpu.memory_space<vmem>>, vector<1x128xf32>,
    %c0_i32_8 = arith.constant 0 : i32
    %14 = arith.cmpi eq, %arg1, %c0_i32_8 : i32
    %15 = arith.extui %14 : i1 to i32
    %c0_i32_9 = arith.constant 0 : i32
    %16 = arith.cmpi ne, %15, %c0_i32_9 : i32
    scf.if %16 {
      %c0_10 = arith.constant 0 : index
      %c0_11 = arith.constant 0 : index
      %17 = vector.load %arg5[%c0_10, %c0_11] : memref<1x128xf32, #tpu.memory_space<vmem>>, vector<1x128xf32>
      %18 = vector.shape_cast %17 : vector<1x128xf32> to vector<1x1x128xf32>
      %cst_12 = arith.constant dense<0.000000e+00> : vector<1xf32>
      %19 = vector.multi_reduction <add>, %18, %cst_12 [1, 2] : vector<1x1x128xf32> to vector<1xf32>
      %20 = vector.shape_cast %19 : vector<1xf32> to vector<1x1x1xf32>
      %21 = vector.extract %20[0, 0, 0] : f32 from vector<1x1x1xf32>
      %c0_13 = arith.constant 0 : index
      %c0_14 = arith.constant 0 : index
      %22 = memref.load %arg4[%c0_13, %c0_14] : memref<1x1xf32, #tpu.memory_space<smem>>
      memref.store %21, %arg4[%c0_13, %c0_14] : memref<1x1xf32, #tpu.memory_space<smem>>
    } else {
    }
    return
  }
  func.func @transform_0(%arg0: i32, %arg1: i32) -> (i32, i32) {
    %c1_i32 = arith.constant 1 : i32
    %0 = arith.muli %arg0, %c1_i32 : i32
    %1 = arith.addi %0, %arg1 : i32
    %c0_i32 = arith.constant 0 : i32
    %c0_i32_0 = arith.constant 0 : i32
    return %1, %c0_i32 : i32, i32
  }
  func.func @transform_1(%arg0: i32, %arg1: i32) -> (i32, i32) {
    %c1_i32 = arith.constant 1 : i32
    %0 = arith.muli %arg0, %c1_i32 : i32
    %1 = arith.addi %0, %arg1 : i32
    %c0_i32 = arith.constant 0 : i32
    %c0_i32_0 = arith.constant 0 : i32
    return %1, %c0_i32 : i32, i32
  }
  func.func @transform_2(%arg0: i32, %arg1: i32) -> (i32, i32) {
    %c0_i32 = arith.constant 0 : i32
    %c0_i32_0 = arith.constant 0 : i32
    return %arg0, %c0_i32 : i32, i32
  }
}

</mosaic_0001>

<llo_original>
// kernel: _corrected_n_loss_impl.1
$region0: #{_corrected_n_loss_impl.1}
  #allocation0 [shape = 'u32[]', space=smem, size = 0x4, offset = 0x4, fixed_abs, tag = 'smem constant byte address 0x4 - core index']
  #allocation1 [shape = 'u32[144,128]{1,0:T(1,128)}', space=vmem, size = 0x12000, scoped, tag = 'internal scratch']
  #allocation2 [shape = 'f32[1,128]{1,0:T(1,128)}', space=vmem, size = 0x200, scoped, tag = 'scratch operand']
  %s0 = inlined_call_operand.vmem [shape: f32[4,128], index: 0, kind: input, shape index: {}]
  %s1 = inlined_call_operand.vmem [shape: f32[4,128], index: 1, kind: input, shape index: {}]
  %s2 = inlined_call_operand.hbm [shape: f32[1,1], index: 2, kind: output, shape index: {}]
  %s3 = sld [smem:[#allocation0]]
  $region26: #{_corrected_n_loss_impl.1} parent=0
    _
  %s5 = ssub.s32 1, %s3
  %s6 = scalar_select 0, %s5, %s3
  $region1: #{_corrected_n_loss_impl.1} parent=0
    #allocation3 [shape = 'u8[512]{0}', space=smem, size = 0x200, scoped, tag = 'output window, operand 0, single buffered']
    #allocation4 [shape = 's32[1]{0}', space=sflag, size = 0x4, scoped, tag = 'scoped memory for _corrected_n_loss_impl.1']
    %7 = vsyncpa [#allocation4], 0
    // Predicated region
    $region2: #{_corrected_n_loss_impl.1} parent=1 // pred_check
      _
    $region3: #{_corrected_n_loss_impl.1} parent=1 // pred_check_branch
      %9 = sbr.rel (0) target = $region5
    $region4: #{_corrected_n_loss_impl.1} parent=1 // pred_region
      %s10 = sadd.s32 0, 0
      %p11 = scmp.lt.s32.totalorder %s10, 0
      %s12 = scalar_select %p11, %s10, 0
      %s13 = smul.addr %s12, 4
      %s14 = scalar_lea.vmem %s0, %s13
      %s15 = sadd.s32 0, 0
    $region5: #{_corrected_n_loss_impl.1} parent=1 // pred_fallthru
      _
    // Predicated region
    $region6: #{_corrected_n_loss_impl.1} parent=1 // pred_check
      _
    $region7: #{_corrected_n_loss_impl.1} parent=1 // pred_check_branch
      %17 = sbr.rel (0) target = $region9
    $region8: #{_corrected_n_loss_impl.1} parent=1 // pred_region
      %s18 = sadd.s32 0, 0
      %p19 = scmp.lt.s32.totalorder %s18, 0
      %s20 = scalar_select %p19, %s18, 0
      %s21 = smul.addr %s20, 4
      %s22 = scalar_lea.vmem %s1, %s21
      %s23 = sadd.s32 0, 0
    $region9: #{_corrected_n_loss_impl.1} parent=1 // pred_fallthru
      _
    %s24 = sadd.s32 0, 0
    %p25 = scmp.lt.s32.totalorder %s24, 0
    %s26 = scalar_select %p25, %s24, 0
    %s27 = smul.addr %s26, 4
    %s28 = scalar_lea.vmem %s0, %s27
    %s29 = sadd.s32 0, 0
    %p30 = scmp.lt.s32.totalorder %s29, 0
    %s31 = scalar_select %p30, %s29, 0
    %s32 = smul.addr %s31, 4
    %s33 = scalar_lea.vmem %s1, %s32
    %s34 = sadd.s32 0, 0
    %p35 = scmp.lt.s32.totalorder %s34, 0
    %s36 = scalar_select %p35, %s34, 0
    %s37 = smul.addr %s36, 4
    %s38 = scalar_lea.vmem %s0, %s37
    %s39 = sadd.s32 0, 0
    %s40 = sadd.s32 0, 0
    %p41 = scmp.lt.s32.totalorder %s40, 0
    %s42 = scalar_select %p41, %s40, 0
    %s43 = smul.addr %s42, 4
    %s44 = scalar_lea.vmem %s1, %s43
    %s45 = sadd.s32 0, 0
    %p46 = scmp.eq.s32.totalorder 0, 0
    // Predicated region
    $region10: #{_corrected_n_loss_impl.1} parent=1 // pred_check
      %p47 = pneg %p46
    $region11: #{_corrected_n_loss_impl.1} parent=1 // pred_check_branch
      %49 = sbr.rel (%p47) target = $region13
    $region12: #{_corrected_n_loss_impl.1} parent=1 // pred_region
      %50 = vst [vmem:[#allocation2] sm:$0x1] 0.0
    $region13: #{_corrected_n_loss_impl.1} parent=1 // pred_fallthru
      _
    %v51 = vld [vmem:[%s38] sm:$0xf]
    %v52 = vld [vmem:[%s44] sm:$0xf]
    %v53 = vlog2.pop %v51
    %v54 = vmul.f32 %v53, 0.6931472
    %v55 = vrcp.pop %v51
    %v56 = vmul.f32 %v52, %v55
    %v57 = vadd.f32 %v54, %v56
    %v58 = vld [vmem:[#allocation2] sm:$0x1]
    %vm59 = vcmask 1043456
    %v60 = vsel %vm59, %v57, 0.0
    %v61 = vrot.slane %v60, 4
    %v62 = vadd.f32 %v60, %v61
    %v63 = vrot.slane %v62, 2
    %v64 = vadd.f32 %v62, %v63
    %v65 = vrot.slane %v64, 1
    %v66 = vadd.f32 %v64, %v65
    %v67 = vadd.f32 %v58, %v66
    %68 = vst [vmem:[#allocation2] sm:$0x1] %v67
    // Predicated region
    $region14: #{_corrected_n_loss_impl.1} parent=1 // pred_check
      %p69 = pneg %p46
    $region15: #{_corrected_n_loss_impl.1} parent=1 // pred_check_branch
      %71 = sbr.rel (%p69) target = $region17
    $region16: #{_corrected_n_loss_impl.1} parent=1 // pred_region
      %v72 = vld [vmem:[#allocation2] sm:$0x1]
      %vm73 = vcmask 1040384
      %v74 = vsel %vm73, %v72, 0.0
      %75 = vadd.xlane.f32.xlu0 %v74
      %v76 = vpop.xlane.xlu0 %75
      %v77 = vrot.slane %v76, 4
      %v78 = vadd.f32 %v76, %v77
      %v79 = vrot.slane %v78, 2
      %v80 = vadd.f32 %v78, %v79
      %v81 = vrot.slane %v80, 1
      %v82 = vadd.f32 %v80, %v81
      %s83 = vtos %v82
      %s84 = scalar_lea.smem [#allocation3], 0
      %85 = sst [smem:[%s84]] %s83
    $region17: #{_corrected_n_loss_impl.1} parent=1 // pred_fallthru
      _
    // Predicated region
    $region18: #{_corrected_n_loss_impl.1} parent=1 // pred_check
      _
    $region19: #{_corrected_n_loss_impl.1} parent=1 // pred_check_branch
      %87 = sbr.rel (0) target = $region21
    $region20: #{_corrected_n_loss_impl.1} parent=1 // pred_region
      %s89 = ssub.s32 16, 16
      %90 = vsyncadd [#allocation4], %s89
      %93 = dma.smem_to_hbm [#allocation3], 16, %s2, [#allocation4]
    $region21: #{_corrected_n_loss_impl.1} parent=1 // pred_fallthru
      _
    // Predicated region
    $region22: #{_corrected_n_loss_impl.1} parent=1 // pred_check
      _
    $region23: #{_corrected_n_loss_impl.1} parent=1 // pred_check_branch
      %95 = sbr.rel (0) target = $region25
    $region24: #{_corrected_n_loss_impl.1} parent=1 // pred_region
      %96 = dma.done [#allocation4], 16
    $region25: #{_corrected_n_loss_impl.1} parent=1 // pred_fallthru
      _
    %97 = sfence
    %98 = vsyncpa [#allocation4], 1

</llo_original>
